<compile_context>
chip_gen: v7x
topology: tpu7x:2x2x1
jax: 0.10.0
libtpu: 0.0.40
codegen_flags: <defaults>
</compile_context>

<pallas_src>
import functools

import jax
import jax.numpy as jnp
from jax.experimental import pallas as pl
from jax.experimental.pallas import tpu as pltpu


def _vmem():
    return pl.BlockSpec(memory_space=pltpu.MemorySpace.VMEM)


# --------------------------------------------------------------------------- #
# Kernel 1: fused encoder head (fc + bias + L2-normalize + 1/T + positives)    #
# --------------------------------------------------------------------------- #

def _encoder_kernel(xq_ref, xk_ref, wq_ref, wk_ref, bq_ref, bk_ref,
                    q_ref, kenq_ref, lpos_ref, *, inv_T):
    """xq: (2B, Cin) pooled query rows [q_224 ; q_160].
       xk: (4B, Cin) pooled key rows [k_1_224 ; k_2_224 ; k_1_160 ; k_2_160]."""
    B = xq_ref.shape[0] // 2

    def head(x, w, b):
        f = jnp.dot(x, w, preferred_element_type=jnp.float32) + b
        ss = jnp.sum(f * f, axis=1, keepdims=True)
        return f * jax.lax.rsqrt(jnp.maximum(ss, 1e-24))   # == x / max(||x||, 1e-12)

    q = head(xq_ref[...], wq_ref[...], bq_ref[...])          # (2B, dim)
    k = head(xk_ref[...], wk_ref[...], bk_ref[...])          # (4B, dim)
    qs = q * inv_T                                           # temperature folded once

    # q (scaled) stored in the matmul dtype -> the lneg kernel needs no casts.
    q_ref[...] = qs.astype(q_ref.dtype)
    # keys that get enqueued: rows [k_1_224 ; k_1_160], stored in the queue dtype.
    kenq_ref[0:B, :] = k[0:B].astype(kenq_ref.dtype)
    kenq_ref[B:2 * B, :] = k[2 * B:3 * B].astype(kenq_ref.dtype)

    # All 8 positive similarities from the LOCAL vreg values (VPU mul + reduce,
    # O(B*dim)); q already carries 1/T, so these are final logit columns.
    # q rows: 0=q_224, 1=q_160 ; k rows: 0=k_1_224, 1=k_2_224, 2=k_1_160, 3=k_2_160
    pairs = ((0, 0), (1, 2), (0, 2), (1, 0),    # l_pos_1_{224,160,224_160,160_224}
             (0, 1), (1, 3), (0, 3), (1, 1))    # l_pos_2_{224,160,224_160,160_224}
    cols = [jnp.sum(qs[a * B:(a + 1) * B] * k[c * B:(c + 1) * B],
                    axis=1, keepdims=True) for a, c in pairs]
    lpos_ref[...] = jnp.concatenate(cols, axis=1)            # (B, 8) f32


def fused_encoder(xq, xk, wq, wk, bq, bk, *, inv_T, q_dtype, k_dtype):
    twoB = xq.shape[0]
    B = twoB // 2
    dim = wq.shape[1]
    # NOTE: production should use dim as a multiple of 128 (lane-dense stores /
    # full MXU contraction); small dim works but leaves lanes masked.
    return pl.pallas_call(
        functools.partial(_encoder_kernel, inv_T=inv_T),
        out_shape=(jax.ShapeDtypeStruct((twoB, dim), q_dtype),   # q / T (matmul dtype)
                   jax.ShapeDtypeStruct((twoB, dim), k_dtype),   # [k_1_224 ; k_1_160]
                   jax.ShapeDtypeStruct((B, 8), jnp.float32)),   # 8 positives
        in_specs=[_vmem()] * 6,
        out_specs=(_vmem(), _vmem(), _vmem()),
    )(xq, xk, wq, wk, bq, bk)


# --------------------------------------------------------------------------- #
# Kernel 2: K-tiled negatives  (2, 2B, K) = q_scaled @ queue^T                 #
# --------------------------------------------------------------------------- #

def _lneg_kernel(q_ref, queue_ref, out_ref):
    # (2B, tk) = q_scaled(2B, C) @ queue_tile(tk, C)^T ; f32 accumulation on MXU.
    out_ref[...] = jax.lax.dot_general(
        q_ref[...], queue_ref[...], (((1,), (1,)), ((), ())),
        preferred_element_type=jnp.float32)


def _pick_k_tile(K, max_tile):
    """Largest divisor of K <= max_tile, preferring lane-dense multiples of 128.
    Always divides K exactly, so grid = K // tk never drops a tail block."""
    if K <= max_tile:
        return K
    cands = [t for t in range(128, max_tile + 1, 128) if K % t == 0]
    if not cands:
        cands = [t for t in range(1, max_tile + 1) if K % t == 0]
    tk = max(cands)
    assert K % tk == 0
    return tk


def moco_lneg(q_scaled, queue_all, *, max_tile=None):
    """(2, 2B, K) negatives, shared by all 8 logit blocks."""
    nq, K, C = queue_all.shape                 # nq = 2 (queue_224 / queue_160)
    twoB = q_scaled.shape[0]
    assert q_scaled.dtype == queue_all.dtype, "q must be pre-cast to the queue dtype"
    itemsize = jnp.dtype(queue_all.dtype).itemsize
    if max_tile is None:
        # v7x (64 MiB physical VMEM) cap: <=2048 f32 / <=4096 bf16 per tile.
        # On v5e/v6e (128 MiB) this can be swept up to 8192.
        max_tile = 4096 if itemsize <= 2 else 2048
    tk = _pick_k_tile(K, max_tile)
    # double-buffered queue tile + double-buffered f32 out tile + resident q + slack
    est = 2 * (tk * C * itemsize + twoB * tk * 4) + twoB * C * itemsize + (2 << 20)
    vmem_limit = int(min(max(2 * est, 16 << 20), 48 << 20))
    grid = (nq, K // tk)
    return pl.pallas_call(
        _lneg_kernel,
        out_shape=jax.ShapeDtypeStruct((nq, twoB, K), jnp.float32),
        grid_spec=pltpu.PrefetchScalarGridSpec(
            num_scalar_prefetch=0,
            grid=grid,
            in_specs=[
                pl.BlockSpec((twoB, C), lambda s, j: (0, 0)),        # resident q
                pl.BlockSpec((None, tk, C), lambda s, j: (s, j, 0)),  # queue stream
            ],
            out_specs=pl.BlockSpec((None, twoB, tk), lambda s, j: (s, 0, j)),
        ),
        compiler_params=pltpu.CompilerParams(
            # Leading nq axis "parallel": on v7x the two queue streams split across
            # the two TensorCores, each with its own resident q copy.  Near-neutral
            # (but harmless) on single-TC v5e/v6e.
            dimension_semantics=("parallel", "parallel"),
            vmem_limit_bytes=vmem_limit),
    )(q_scaled, queue_all)


# --------------------------------------------------------------------------- #
# Kernel 3: in-place queue append (dequeue_and_enqueue)                        #
# --------------------------------------------------------------------------- #

def _enqueue_kernel(ptr_ref, keys_ref, queue_in_ref, queue_out_ref, sem):
    del queue_in_ref                  # same HBM buffer as queue_out_ref (aliased)
    b = keys_ref.shape[0] // 2
    ptr = ptr_ref[0]
    if b % 8 == 0:                    # static alignment hint for the DMA offset
        ptr = pl.multiple_of(ptr, 8)
    # HBM -> HBM DMA straight into the aliased queue (no VMEM staging round trip).
    c224 = pltpu.make_async_copy(keys_ref.at[pl.ds(0, b), :],
                                 queue_out_ref.at[0, pl.ds(ptr, b), :], sem.at[0])
    c160 = pltpu.make_async_copy(keys_ref.at[pl.ds(b, b), :],
                                 queue_out_ref.at[1, pl.ds(ptr, b), :], sem.at[1])
    c224.start()
    c160.start()
    c224.wait()
    c160.wait()


def enqueue_keys(ptr, keys, queue_all):
    return pl.pallas_call(
        _enqueue_kernel,
        out_shape=jax.ShapeDtypeStruct(queue_all.shape, queue_all.dtype),
        in_specs=[pl.BlockSpec(memory_space=pltpu.MemorySpace.SMEM),
                  pl.BlockSpec(memory_space=pl.ANY),      # keys stay in HBM
                  pl.BlockSpec(memory_space=pl.ANY)],
        out_specs=pl.BlockSpec(memory_space=pl.ANY),
        scratch_shapes=[pltpu.SemaphoreType.DMA((2,))],
        input_output_aliases={2: 0},   # queue updated in place (B rows per slab)
    )(ptr, keys, queue_all)


# Donate the queue at the jit boundary so input_output_aliases is a true in-place
# append and XLA never inserts a defensive full-(2, K, dim) copy per step.
_enqueue_jit = jax.jit(enqueue_keys, donate_argnums=(2,))


# --------------------------------------------------------------------------- #
# MoCo module                                                                  #
# --------------------------------------------------------------------------- #

class MoCoPallas:
    """MoCo with a synthetic base_encoder (global-avg-pool + fc(Cin -> dim))."""

    def __init__(self, key, in_channels=4, dim=32, K=64, m=0.999, T=0.07,
                 mlp=False, matmul_dtype=jnp.bfloat16):
        # matmul_dtype: bf16 by default.  The queue is *stored* in this dtype, so
        # the HBM-bound negatives matmul streams half the bytes, and the v7x MXU is
        # bf16/fp8-only (f32 dots lower to multi-pass emulation).  Accumulation is
        # f32 inside the kernels; logits are perturbed at only ~1e-3 relative.
        self.K = K
        self.m = m
        self.T = T
        self.matmul_dtype = matmul_dtype
        self.training = True
        kw, kq = jax.random.split(key, 2)

        w = jax.random.normal(kw, (in_channels, dim), jnp.float32) * 0.1
        b = jnp.zeros((1, dim), jnp.float32)
        self.enc_q = {"w": w, "b": b}
        self.enc_k = {"w": w, "b": b}          # param_k.data.copy_(param_q.data)
        # TODO(synk): mlp projection head (Linear+ReLU+fc) not modeled by the
        # synthetic pool+fc encoder stand-in.

        # Queues stored stacked & key-major in the matmul dtype: (2, K, dim).
        # Equivalent to the PyTorch (dim, K) f32 buffers (see queue_224 / queue_160
        # properties), but row-appendable by DMA and streamable in lane-dense
        # (tk, dim) tiles for the negatives matmul.
        qinit = jax.random.normal(kq, (2, K, dim), jnp.float32)
        # F.normalize(queue, dim=0) on the (dim, K) buffer == per-key L2 normalize.
        qinit = qinit * jax.lax.rsqrt(
            jnp.maximum(jnp.sum(qinit * qinit, axis=2, keepdims=True), 1e-24))
        self.queue_all = qinit.astype(matmul_dtype)
        self.queue_ptr = jnp.zeros((1,), jnp.int32)   # device-side (no host sync)

    @property
    def queue_224(self):        # (dim, K) f32 view, matching the PyTorch buffer
        return jnp.transpose(self.queue_all[0]).astype(jnp.float32)

    @property
    def queue_160(self):
        return jnp.transpose(self.queue_all[1]).astype(jnp.float32)

    def _momentum_update_key_encoder(self):
        self.enc_k = {
            n: self.enc_k[n] * self.m + self.enc_q[n] * (1.0 - self.m)
            for n in self.enc_k
        }

    def _dequeue_and_enqueue(self, keys_enq):
        # TODO(synk): concat_all_gather is a cross-device collective; identity here
        # (single device, world_size == 1).
        batch_size = keys_enq.shape[0] // 2
        assert self.K % batch_size == 0
        self.queue_all = _enqueue_jit(self.queue_ptr, keys_enq, self.queue_all)
        self.queue_ptr = (self.queue_ptr + batch_size) % self.K

    def forward(self, im_q, im_k1, im_k2, im_label, lam, gpu_rank, node_rank,
                ngpu_per_node, nrank_per_subg, groups):
        # TODO(synk): eval branch (all-gathered q_mlp) omitted; training path only.
        im_q_224, im_q_160 = im_q[0], im_q[1]
        B = im_q_224.shape[0]

        # Momentum update of the key encoder (encoder_q is untouched, so doing it
        # up front matches the reference ordering semantics).
        self._momentum_update_key_encoder()

        # TODO(synk): _group_batch_shuffle_ddp / _group_batch_unshuffle_ddp are
        # cross-device batch permutations that compose to identity for a per-sample
        # encoder on a single device; skipped.

        # Global average pool in plain JAX (do NOT fold it into the fc weight):
        # one streaming reduce over each image batch, then tiny (rows, Cin) inputs.
        def gap(x):
            return jnp.mean(x, axis=(2, 3))

        xq = jnp.concatenate([gap(im_q_224), gap(im_q_160)], axis=0)      # (2B, Cin)
        xk = jnp.concatenate([gap(im_k1[0]), gap(im_k2[0]),
                              gap(im_k1[1]), gap(im_k2[1])], axis=0)      # (4B, Cin)

        # One fused launch: fc + bias + L2-normalize for all 6 batches (two fused
        # matmuls), 1/T folded into q, the keys to enqueue, and all 8 positives
        # computed locally as VPU mul + reduce.
        q_scaled, keys_enq, lpos = fused_encoder(
            xq, xk, self.enc_q["w"], self.enc_k["w"],
            self.enc_q["b"], self.enc_k["b"],
            inv_T=1.0 / self.T,
            q_dtype=self.matmul_dtype, k_dtype=self.queue_all.dtype)

        # The 4 unique q @ queue^T products (shared by all 8 logits), K-tiled,
        # bf16-streamed / f32-accumulated.
        l_neg = moco_lneg(q_scaled, self.queue_all)
        ln_224 = l_neg[0, 0:B]            # q_224 @ queue_224
        ln_160_224 = l_neg[0, B:2 * B]    # q_160 @ queue_224
        ln_224_160 = l_neg[1, 0:B]        # q_224 @ queue_160
        ln_160 = l_neg[1, B:2 * B]        # q_160 @ queue_160

        # TODO(synk): at production K these 8 (B, 1+K) concats roughly double this
        # stage's HBM traffic; the copy-free alternative is to return (lpos, l_neg)
        # and fold the positive column into the loss, which changes the interface.
        def cat(i, ln):
            return jnp.concatenate([lpos[:, i:i + 1], ln], axis=1)

        logits_1_224 = cat(0, ln_224)
        logits_1_160 = cat(1, ln_160)
        logits_1_224_160 = cat(2, ln_224_160)
        logits_1_160_224 = cat(3, ln_160_224)
        logits_2_224 = cat(4, ln_224)
        logits_2_160 = cat(5, ln_160)
        logits_2_224_160 = cat(6, ln_224_160)
        logits_2_160_224 = cat(7, ln_160_224)

        labels = jnp.zeros((B,), dtype=jnp.int32)     # torch.long -> int32 on TPU

        self._dequeue_and_enqueue(keys_enq)           # in-place, donated queue

        return ([logits_1_224, logits_1_160, logits_1_224_160, logits_1_160_224],
                [logits_2_224, logits_2_160, logits_2_224_160, logits_2_160_224],
                labels)


# --------------------------------------------------------------------------- #
# demo + self-check                                                            #
# --------------------------------------------------------------------------- #

if __name__ == "__main__":
    key = jax.random.PRNGKey(0)
    k1, k2, k3, k4, k5, k6, k7 = jax.random.split(key, 7)

    B, Cin, dim, K = 2, 4, 32, 64
    im_q = [jax.random.normal(k1, (B, Cin, 16, 16), jnp.float32),
            jax.random.normal(k2, (B, Cin, 12, 12), jnp.float32)]
    im_k1 = [jax.random.normal(k3, (B, Cin, 16, 16), jnp.float32),
             jax.random.normal(k4, (B, Cin, 12, 12), jnp.float32)]
    im_k2 = [jax.random.normal(k5, (B, Cin, 16, 16), jnp.float32),
             jax.random.normal(k6, (B, Cin, 12, 12), jnp.float32)]
    im_label = jnp.zeros((B,), jnp.int32)
    lam = 0.5

    model = MoCoPallas(k7, in_channels=Cin, dim=dim, K=K, m=0.999, T=0.07)
    # copy BEFORE forward: the live queue buffer is donated by the enqueue step
    queue_before = jnp.copy(model.queue_all)             # (2, K, dim), storage dtype

    logits_1, logits_2, labels = model.forward(
        im_q, im_k1, im_k2, im_label, lam,
        gpu_rank=0, node_rank=0, ngpu_per_node=1, nrank_per_subg=1, groups=[None])

    jax.block_until_ready((logits_1, logits_2, labels,
                           model.queue_all, model.queue_ptr))

    assert all(l.shape == (B, 1 + K) for l in logits_1 + logits_2)
    assert labels.shape == (B,)

    # ---- pure-JAX reference (same math as the PyTorch module; the only extra
    #      rounding is the bf16 storage of q/T and of the queue) ----
    w, b = model.enc_q["w"], model.enc_q["b"]

    def ref_enc(x):
        f = jnp.mean(x, axis=(2, 3)) @ w + b
        n = jnp.sqrt(jnp.sum(f * f, axis=1, keepdims=True))
        return f / jnp.maximum(n, 1e-12)

    q224_r, q160_r = ref_enc(im_q[0]), ref_enc(im_q[1])
    k1224_r, k2224_r = ref_enc(im_k1[0]), ref_enc(im_k2[0])
    k1160_r, k2160_r = ref_enc(im_k1[1]), ref_enc(im_k2[1])
    queue224_b = queue_before[0].astype(jnp.float32)       # (K, dim)
    queue160_b = queue_before[1].astype(jnp.float32)

    def ref_logits(qr, kr, queue_kd):
        qs = qr / model.T
        lpos = jnp.sum(qs * kr, axis=1, keepdims=True)
        qsb = qs.astype(model.matmul_dtype).astype(jnp.float32)  # bf16 storage of q/T
        lneg = qsb @ queue_kd.T
        return jnp.concatenate([lpos, lneg], axis=1)

    expected = [ref_logits(q224_r, k1224_r, queue224_b),
                ref_logits(q160_r, k1160_r, queue160_b),
                ref_logits(q224_r, k1160_r, queue160_b),
                ref_logits(q160_r, k1224_r, queue224_b),
                ref_logits(q224_r, k2224_r, queue224_b),
                ref_logits(q160_r, k2160_r, queue160_b),
                ref_logits(q224_r, k2160_r, queue160_b),
                ref_logits(q160_r, k2224_r, queue224_b)]
    for got, exp in zip(logits_1 + logits_2, expected):
        assert jnp.allclose(got, exp, atol=1e-2, rtol=1e-2), "logits mismatch"

    # queue update: rows [0:B] of each queue replaced by k_1_* (in storage dtype),
    # remaining rows untouched bit-for-bit, ptr advanced.
    assert jnp.allclose(model.queue_all[0, :B].astype(jnp.float32),
                        k1224_r, atol=1e-2, rtol=1e-2)
    assert jnp.allclose(model.queue_all[1, :B].astype(jnp.float32),
                        k1160_r, atol=1e-2, rtol=1e-2)
    assert jnp.array_equal(model.queue_all[:, B:], queue_before[:, B:])
    assert int(model.queue_ptr[0]) == B % model.K

    print("KERNEL_OK")
</pallas_src>

<mosaic_0001>
module attributes {stable_mosaic.version = 11 : i64} {
  func.func @_encoder_kernel(%arg0: memref<4x4xf32, #tpu.memory_space<vmem>>, %arg1: memref<8x4xf32, #tpu.memory_space<vmem>>, %arg2: memref<4x32xf32, #tpu.memory_space<vmem>>, %arg3: memref<4x32xf32, #tpu.memory_space<vmem>>, %arg4: memref<1x32xf32, #tpu.memory_space<vmem>>, %arg5: memref<1x32xf32, #tpu.memory_space<vmem>>, %arg6: memref<4x32xbf16, #tpu.memory_space<vmem>>, %arg7: memref<4x32xbf16, #tpu.memory_space<vmem>>, %arg8: memref<2x8xf32, #tpu.memory_space<vmem>>) attributes {dimension_semantics = [], scalar_prefetch = 0 : i64, scratch_operands = 0 : i64, tpu.core_type = #tpu.core_type<tc>} {
    %c0 = arith.constant 0 : index
    %c0_0 = arith.constant 0 : index
    %0 = vector.load %arg0[%c0, %c0_0] : memref<4x4xf32, #tpu.memory_space<vmem>>, vector<4x4xf32>
    %c0_1 = arith.constant 0 : index
    %c0_2 = arith.constant 0 : index
    %1 = vector.load %arg2[%c0_1, %c0_2] : memref<4x32xf32, #tpu.memory_space<vmem>>, vector<4x32xf32>
    %c0_3 = arith.constant 0 : index
    %c0_4 = arith.constant 0 : index
    %2 = vector.load %arg4[%c0_3, %c0_4] : memref<1x32xf32, #tpu.memory_space<vmem>>, vector<1x32xf32>
    %cst = arith.constant dense<0.000000e+00> : vector<4x32xf32>
    %3 = tpu.matmul %0, %1, %cst {dimension_numbers = #tpu.dot_dimension_numbers<[1], [0], [0], [1], [0, 0, 1, 1], [], []>} : vector<4x4xf32>, vector<4x32xf32>, vector<4x32xf32> -> vector<4x32xf32>
    %4 = vector.broadcast %2 : vector<1x32xf32> to vector<4x32xf32>
    %5 = arith.addf %3, %4 : vector<4x32xf32>
    %6 = arith.mulf %5, %5 : vector<4x32xf32>
    %cst_5 = arith.constant dense<0.000000e+00> : vector<4xf32>
    %7 = vector.multi_reduction <add>, %6, %cst_5 [1] : vector<4x32xf32> to vector<4xf32>
    %8 = vector.shape_cast %7 : vector<4xf32> to vector<4x1xf32>
    %cst_6 = arith.constant 1.000000e-24 : f32
    %9 = vector.broadcast %cst_6 : f32 to vector<4x1xf32>
    %10 = arith.maximumf %8, %9 : vector<4x1xf32>
    %11 = math.rsqrt %10 : vector<4x1xf32>
    %12 = vector.broadcast %11 : vector<4x1xf32> to vector<4x32xf32>
    %13 = arith.mulf %5, %12 : vector<4x32xf32>
    %c0_7 = arith.constant 0 : index
    %c0_8 = arith.constant 0 : index
    %14 = vector.load %arg1[%c0_7, %c0_8] : memref<8x4xf32, #tpu.memory_space<vmem>>, vector<8x4xf32>
    %c0_9 = arith.constant 0 : index
    %c0_10 = arith.constant 0 : index
    %15 = vector.load %arg3[%c0_9, %c0_10] : memref<4x32xf32, #tpu.memory_space<vmem>>, vector<4x32xf32>
    %c0_11 = arith.constant 0 : index
    %c0_12 = arith.constant 0 : index
    %16 = vector.load %arg5[%c0_11, %c0_12] : memref<1x32xf32, #tpu.memory_space<vmem>>, vector<1x32xf32>
    %cst_13 = arith.constant dense<0.000000e+00> : vector<8x32xf32>
    %17 = tpu.matmul %14, %15, %cst_13 {dimension_numbers = #tpu.dot_dimension_numbers<[1], [0], [0], [1], [0, 0, 1, 1], [], []>} : vector<8x4xf32>, vector<4x32xf32>, vector<8x32xf32> -> vector<8x32xf32>
    %18 = vector.broadcast %16 : vector<1x32xf32> to vector<8x32xf32>
    %19 = arith.addf %17, %18 : vector<8x32xf32>
    %20 = arith.mulf %19, %19 : vector<8x32xf32>
    %cst_14 = arith.constant dense<0.000000e+00> : vector<8xf32>
    %21 = vector.multi_reduction <add>, %20, %cst_14 [1] : vector<8x32xf32> to vector<8xf32>
    %22 = vector.shape_cast %21 : vector<8xf32> to vector<8x1xf32>
    %cst_15 = arith.constant 1.000000e-24 : f32
    %23 = vector.broadcast %cst_15 : f32 to vector<8x1xf32>
    %24 = arith.maximumf %22, %23 : vector<8x1xf32>
    %25 = math.rsqrt %24 : vector<8x1xf32>
    %26 = vector.broadcast %25 : vector<8x1xf32> to vector<8x32xf32>
    %27 = arith.mulf %19, %26 : vector<8x32xf32>
    %cst_16 = arith.constant 14.2857141 : f32
    %28 = vector.broadcast %cst_16 : f32 to vector<4x32xf32>
    %29 = arith.mulf %13, %28 : vector<4x32xf32>
    %30 = arith.truncf %29 : vector<4x32xf32> to vector<4x32xbf16>
    %c0_17 = arith.constant 0 : index
    %c0_18 = arith.constant 0 : index
    %31 = vector.load %arg6[%c0_17, %c0_18] : memref<4x32xbf16, #tpu.memory_space<vmem>>, vector<4x32xbf16>
    tpu.vector_store %arg6[%c0_17, %c0_18], %30 {strides = array<i32>} : memref<4x32xbf16, #tpu.memory_space<vmem>>, vector<4x32xbf16>,
    %32 = vector.extract_strided_slice %27 {offsets = [0, 0], sizes = [2, 32], strides = [1, 1]} : vector<8x32xf32> to vector<2x32xf32>
    %33 = arith.truncf %32 : vector<2x32xf32> to vector<2x32xbf16>
    %c0_19 = arith.constant 0 : index
    %c0_20 = arith.constant 0 : index
    %34 = vector.load %arg7[%c0_19, %c0_20] : memref<4x32xbf16, #tpu.memory_space<vmem>>, vector<2x32xbf16>
    tpu.vector_store %arg7[%c0_19, %c0_20], %33 {strides = array<i32>} : memref<4x32xbf16, #tpu.memory_space<vmem>>, vector<2x32xbf16>,
    %35 = vector.extract_strided_slice %27 {offsets = [4, 0], sizes = [2, 32], strides = [1, 1]} : vector<8x32xf32> to vector<2x32xf32>
    %36 = arith.truncf %35 : vector<2x32xf32> to vector<2x32xbf16>
    %c2 = arith.constant 2 : index
    %c0_21 = arith.constant 0 : index
    %37 = vector.load %arg7[%c2, %c0_21] : memref<4x32xbf16, #tpu.memory_space<vmem>>, vector<2x32xbf16>
    tpu.vector_store %arg7[%c2, %c0_21], %36 {strides = array<i32>} : memref<4x32xbf16, #tpu.memory_space<vmem>>, vector<2x32xbf16>,
    %38 = vector.extract_strided_slice %29 {offsets = [0, 0], sizes = [2, 32], strides = [1, 1]} : vector<4x32xf32> to vector<2x32xf32>
    %39 = vector.extract_strided_slice %27 {offsets = [0, 0], sizes = [2, 32], strides = [1, 1]} : vector<8x32xf32> to vector<2x32xf32>
    %40 = arith.mulf %38, %39 : vector<2x32xf32>
    %cst_22 = arith.constant dense<0.000000e+00> : vector<2xf32>
    %41 = vector.multi_reduction <add>, %40, %cst_22 [1] : vector<2x32xf32> to vector<2xf32>
    %42 = vector.shape_cast %41 : vector<2xf32> to vector<2x1xf32>
    %43 = vector.extract_strided_slice %29 {offsets = [2, 0], sizes = [2, 32], strides = [1, 1]} : vector<4x32xf32> to vector<2x32xf32>
    %44 = vector.extract_strided_slice %27 {offsets = [4, 0], sizes = [2, 32], strides = [1, 1]} : vector<8x32xf32> to vector<2x32xf32>
    %45 = arith.mulf %43, %44 : vector<2x32xf32>
    %cst_23 = arith.constant dense<0.000000e+00> : vector<2xf32>
    %46 = vector.multi_reduction <add>, %45, %cst_23 [1] : vector<2x32xf32> to vector<2xf32>
    %47 = vector.shape_cast %46 : vector<2xf32> to vector<2x1xf32>
    %48 = vector.extract_strided_slice %29 {offsets = [0, 0], sizes = [2, 32], strides = [1, 1]} : vector<4x32xf32> to vector<2x32xf32>
    %49 = vector.extract_strided_slice %27 {offsets = [4, 0], sizes = [2, 32], strides = [1, 1]} : vector<8x32xf32> to vector<2x32xf32>
    %50 = arith.mulf %48, %49 : vector<2x32xf32>
    %cst_24 = arith.constant dense<0.000000e+00> : vector<2xf32>
    %51 = vector.multi_reduction <add>, %50, %cst_24 [1] : vector<2x32xf32> to vector<2xf32>
    %52 = vector.shape_cast %51 : vector<2xf32> to vector<2x1xf32>
    %53 = vector.extract_strided_slice %29 {offsets = [2, 0], sizes = [2, 32], strides = [1, 1]} : vector<4x32xf32> to vector<2x32xf32>
    %54 = vector.extract_strided_slice %27 {offsets = [0, 0], sizes = [2, 32], strides = [1, 1]} : vector<8x32xf32> to vector<2x32xf32>
    %55 = arith.mulf %53, %54 : vector<2x32xf32>
    %cst_25 = arith.constant dense<0.000000e+00> : vector<2xf32>
    %56 = vector.multi_reduction <add>, %55, %cst_25 [1] : vector<2x32xf32> to vector<2xf32>
    %57 = vector.shape_cast %56 : vector<2xf32> to vector<2x1xf32>
    %58 = vector.extract_strided_slice %29 {offsets = [0, 0], sizes = [2, 32], strides = [1, 1]} : vector<4x32xf32> to vector<2x32xf32>
    %59 = vector.extract_strided_slice %27 {offsets = [2, 0], sizes = [2, 32], strides = [1, 1]} : vector<8x32xf32> to vector<2x32xf32>
    %60 = arith.mulf %58, %59 : vector<2x32xf32>
    %cst_26 = arith.constant dense<0.000000e+00> : vector<2xf32>
    %61 = vector.multi_reduction <add>, %60, %cst_26 [1] : vector<2x32xf32> to vector<2xf32>
    %62 = vector.shape_cast %61 : vector<2xf32> to vector<2x1xf32>
    %63 = vector.extract_strided_slice %29 {offsets = [2, 0], sizes = [2, 32], strides = [1, 1]} : vector<4x32xf32> to vector<2x32xf32>
    %64 = vector.extract_strided_slice %27 {offsets = [6, 0], sizes = [2, 32], strides = [1, 1]} : vector<8x32xf32> to vector<2x32xf32>
    %65 = arith.mulf %63, %64 : vector<2x32xf32>
    %cst_27 = arith.constant dense<0.000000e+00> : vector<2xf32>
    %66 = vector.multi_reduction <add>, %65, %cst_27 [1] : vector<2x32xf32> to vector<2xf32>
    %67 = vector.shape_cast %66 : vector<2xf32> to vector<2x1xf32>
    %68 = vector.extract_strided_slice %29 {offsets = [0, 0], sizes = [2, 32], strides = [1, 1]} : vector<4x32xf32> to vector<2x32xf32>
    %69 = vector.extract_strided_slice %27 {offsets = [6, 0], sizes = [2, 32], strides = [1, 1]} : vector<8x32xf32> to vector<2x32xf32>
    %70 = arith.mulf %68, %69 : vector<2x32xf32>
    %cst_28 = arith.constant dense<0.000000e+00> : vector<2xf32>
    %71 = vector.multi_reduction <add>, %70, %cst_28 [1] : vector<2x32xf32> to vector<2xf32>
    %72 = vector.shape_cast %71 : vector<2xf32> to vector<2x1xf32>
    %73 = vector.extract_strided_slice %29 {offsets = [2, 0], sizes = [2, 32], strides = [1, 1]} : vector<4x32xf32> to vector<2x32xf32>
    %74 = vector.extract_strided_slice %27 {offsets = [2, 0], sizes = [2, 32], strides = [1, 1]} : vector<8x32xf32> to vector<2x32xf32>
    %75 = arith.mulf %73, %74 : vector<2x32xf32>
    %cst_29 = arith.constant dense<0.000000e+00> : vector<2xf32>
    %76 = vector.multi_reduction <add>, %75, %cst_29 [1] : vector<2x32xf32> to vector<2xf32>
    %77 = vector.shape_cast %76 : vector<2xf32> to vector<2x1xf32>
    %78 = tpu.concatenate %42, %47, %52, %57, %62, %67, %72, %77 in 1 : vector<2x1xf32>, vector<2x1xf32>, vector<2x1xf32>, vector<2x1xf32>, vector<2x1xf32>, vector<2x1xf32>, vector<2x1xf32>, vector<2x1xf32> -> vector<2x8xf32>
    %c0_30 = arith.constant 0 : index
    %c0_31 = arith.constant 0 : index
    %79 = vector.load %arg8[%c0_30, %c0_31] : memref<2x8xf32, #tpu.memory_space<vmem>>, vector<2x8xf32>
    tpu.vector_store %arg8[%c0_30, %c0_31], %78 {strides = array<i32>} : memref<2x8xf32, #tpu.memory_space<vmem>>, vector<2x8xf32>,
    return
  }
}

</mosaic_0001>

<llo_original>
// kernel: tpu_custom_call.1
$region0: #{tpu_custom_call.1}
  #allocation0 [shape = 'u32[]', space=smem, size = 0x4, offset = 0x4, fixed_abs, tag = 'smem constant byte address 0x4 - core index']
  #allocation1 [shape = 'u32[144,128]{1,0:T(1,128)}', space=vmem, size = 0x12000, scoped, tag = 'internal scratch']
  %s0 = inlined_call_operand.vmem [shape: f32[4,4], index: 0, kind: input, shape index: {}]
  %s1 = inlined_call_operand.vmem [shape: f32[8,4], index: 1, kind: input, shape index: {}]
  %s2 = inlined_call_operand.vmem [shape: f32[4,32], index: 2, kind: input, shape index: {}]
  %s3 = inlined_call_operand.vmem [shape: f32[4,32], index: 3, kind: input, shape index: {}]
  %s4 = inlined_call_operand.vmem [shape: f32[1,32], index: 4, kind: input, shape index: {}]
  %s5 = inlined_call_operand.vmem [shape: f32[1,32], index: 5, kind: input, shape index: {}]
  %s6 = inlined_call_operand.hbm [shape: bf16[4,32], index: 6, kind: output, shape index: {0}]
  %s7 = inlined_call_operand.hbm [shape: bf16[4,32], index: 7, kind: output, shape index: {1}]
  %s8 = inlined_call_operand.hbm [shape: f32[2,8], index: 8, kind: output, shape index: {2}]
  %9 = xla_tuple %s6, %s7, %s8
  %s10 = sld [smem:[#allocation0]]
  $region50: #{tpu_custom_call.1} parent=0
    _
  %s12 = ssub.s32 1, %s10
  %s13 = scalar_select 0, %s12, %s10
  $region1: #{tpu_custom_call.1} parent=0
    #allocation2 [shape = 'u8[1024]{0}', space=vmem, size = 0x400, scoped, tag = 'output window, operand 0, single buffered']
    #allocation3 [shape = 's32[1]{0}', space=sflag, size = 0x4, scoped, tag = 'scoped memory for tpu_custom_call.1']
    #allocation4 [shape = 'u8[1024]{0}', space=vmem, size = 0x400, scoped, tag = 'output window, operand 1, single buffered']
    #allocation5 [shape = 's32[1]{0}', space=sflag, size = 0x4, scoped, tag = 'scoped memory for tpu_custom_call.1']
    #allocation6 [shape = 'u8[1024]{0}', space=vmem, size = 0x400, scoped, tag = 'output window, operand 2, single buffered']
    %14 = vsyncpa [#allocation3], 0
    %15 = vsyncpa [#allocation5], 0
    // Predicated region
    $region2: #{tpu_custom_call.1} parent=1 // pred_check
      _
    $region3: #{tpu_custom_call.1} parent=1 // pred_check_branch
      %17 = sbr.rel (0) target = $region5
    $region4: #{tpu_custom_call.1} parent=1 // pred_region
      _
    $region5: #{tpu_custom_call.1} parent=1 // pred_fallthru
      _
    // Predicated region
    $region6: #{tpu_custom_call.1} parent=1 // pred_check
      _
    $region7: #{tpu_custom_call.1} parent=1 // pred_check_branch
      %19 = sbr.rel (0) target = $region9
    $region8: #{tpu_custom_call.1} parent=1 // pred_region
      _
    $region9: #{tpu_custom_call.1} parent=1 // pred_fallthru
      _
    // Predicated region
    $region10: #{tpu_custom_call.1} parent=1 // pred_check
      _
    $region11: #{tpu_custom_call.1} parent=1 // pred_check_branch
      %21 = sbr.rel (0) target = $region13
    $region12: #{tpu_custom_call.1} parent=1 // pred_region
      _
    $region13: #{tpu_custom_call.1} parent=1 // pred_fallthru
      _
    // Predicated region
    $region14: #{tpu_custom_call.1} parent=1 // pred_check
      _
    $region15: #{tpu_custom_call.1} parent=1 // pred_check_branch
      %23 = sbr.rel (0) target = $region17
    $region16: #{tpu_custom_call.1} parent=1 // pred_region
      _
    $region17: #{tpu_custom_call.1} parent=1 // pred_fallthru
      _
    // Predicated region
    $region18: #{tpu_custom_call.1} parent=1 // pred_check
      _
    $region19: #{tpu_custom_call.1} parent=1 // pred_check_branch
      %25 = sbr.rel (0) target = $region21
    $region20: #{tpu_custom_call.1} parent=1 // pred_region
      _
    $region21: #{tpu_custom_call.1} parent=1 // pred_fallthru
      _
    // Predicated region
    $region22: #{tpu_custom_call.1} parent=1 // pred_check
      _
    $region23: #{tpu_custom_call.1} parent=1 // pred_check_branch
      %27 = sbr.rel (0) target = $region25
    $region24: #{tpu_custom_call.1} parent=1 // pred_region
      _
    $region25: #{tpu_custom_call.1} parent=1 // pred_fallthru
      _
    %v28 = vld [vmem:[%s0] sm:$0xf]
    %v29 = vld [vmem:[%s2] sm:$0xf]
    %v30 = vld [vmem:[%s4] sm:$0x1]
    %v32 = vlaneseq
    %v33 = vshrl.u32 %v32, 7
    %v34 = vsub.s32 0, %v33
    %v35 = vrot.slane %v30, %v34
    %vm37 = vcmask 31744
    %v39 = vsel %vm37, %v28, 0
    %vm41 = vcmask 1043456
    %v43 = vsel %vm41, %v29, 0
    %45 = vmatprep.subr.mxu0 0.0
    %46 = vmatpush1.msra.mxu0 %v43
    %47 = vmatprep.subr.mxu0 0.0
    %48 = vmatpush1.msra.mxu0 0.0
    %49 = vmatprep.subr.mxu0 0.0
    %50 = vmatpush1.msra.mxu0 0.0
    %51 = vmatprep.subr.mxu0 0.0
    %52 = vmatpush1.msra.mxu0 0.0
    %53 = vmatprep.subr.mxu0 0.0
    %54 = vmatpush1.msra.mxu0 0.0
    %55 = vmatprep.subr.mxu0 0.0
    %56 = vmatpush1.msra.mxu0 0.0
    %57 = vmatprep.subr.mxu0 0.0
    %58 = vmatpush1.msra.mxu0 0.0
    %59 = vmatprep.subr.mxu0 0.0
    %60 = vmatpush1.msra.mxu0 0.0
    %61 = vmatprep.subr.mxu0 0.0
    %62 = vmatpush1.msra.mxu0 0.0
    %63 = vmatprep.subr.mxu0 0.0
    %64 = vmatpush1.msra.mxu0 0.0
    %65 = vmatprep.subr.mxu0 0.0
    %66 = vmatpush1.msra.mxu0 0.0
    %67 = vmatprep.subr.mxu0 0.0
    %68 = vmatpush1.msra.mxu0 0.0
    %69 = vmatprep.subr.mxu0 0.0
    %70 = vmatpush1.msra.mxu0 0.0
    %71 = vmatprep.subr.mxu0 0.0
    %72 = vmatpush1.msra.mxu0 0.0
    %73 = vmatprep.subr.mxu0 0.0
    %74 = vmatpush1.msra.mxu0 0.0
    %75 = vmatprep.subr.mxu0 0.0
    %76 = vmatpush1.msra.mxu0 0.0
    %77 = vmatprep.subr.mxu0 0.0
    %78 = vmatpush1.msra.mxu0 0.0
    %79 = vmatprep.subr.mxu0 0.0
    %80 = vmatpush1.msra.mxu0 0.0
    %81 = vmatprep.subr.mxu0 0.0
    %82 = vmatpush1.msra.mxu0 0.0
    %83 = vmatprep.subr.mxu0 0.0
    %84 = vmatpush1.msra.mxu0 0.0
    %85 = vmatprep.subr.mxu0 0.0
    %86 = vmatpush1.msra.mxu0 0.0
    %87 = vmatprep.subr.mxu0 0.0
    %88 = vmatpush1.msra.mxu0 0.0
    %89 = vmatprep.subr.mxu0 0.0
    %90 = vmatpush1.msra.mxu0 0.0
    %91 = vmatprep.subr.mxu0 0.0
    %92 = vmatpush1.msra.mxu0 0.0
    %93 = vmatprep.subr.mxu0 0.0
    %94 = vmatpush1.msra.mxu0 0.0
    %95 = vmatprep.subr.mxu0 0.0
    %96 = vmatpush1.msra.mxu0 0.0
    %97 = vmatprep.subr.mxu0 0.0
    %98 = vmatpush1.msra.mxu0 0.0
    %99 = vmatprep.subr.mxu0 0.0
    %100 = vmatpush1.msra.mxu0 0.0
    %101 = vmatprep.subr.mxu0 0.0
    %102 = vmatpush1.msra.mxu0 0.0
    %103 = vmatprep.subr.mxu0 0.0
    %104 = vmatpush1.msra.mxu0 0.0
    %105 = vmatprep.subr.mxu0 0.0
    %106 = vmatpush1.msra.mxu0 0.0
    %107 = vmatprep.subr.mxu0 0.0
    %108 = vmatpush1.msra.mxu0 0.0
    %109 = vmatprep.mubr.f32.mxu0 0.0
    %110 = vmatmul.mubr.f32.gmra.mrb[0].mxu0 %v39
    %v111 = vpop.f32.mrb[0].mxu0
    %v112 = vadd.f32 %v35, %v111
    %v113 = vpop.f32.mrb[0].mxu0
    %114 = vdwg.mxu0
    %v115 = vmul.f32 %v112, %v112
    %vm116 = vcmask 257024
    %v117 = vsel %vm116, %v115, 0.0
    %118 = vadd.xlane.f32.xlu0 %v117
    %v119 = vpop.xlane.xlu0 %118
    %v120 = vmax.f32 %v119, 1e-24
    %v121 = vrsqrt.pop %v120
    %v122 = vmul.f32 %v112, %v121
    %v123 = vld [vmem:[%s1] sm:$0xff]
    %v124 = vld [vmem:[%s3] sm:$0xf]
    %v125 = vld [vmem:[%s5] sm:$0x1]
    %v127 = vlaneseq
    %v128 = vshrl.u32 %v127, 7
    %v129 = vsub.s32 0, %v128
    %v130 = vrot.slane %v125, %v129
    %v133 = vsel %vm37, %v123, 0
    %v136 = vsel %vm41, %v124, 0
    %138 = vmatprep.subr.mxu0 0.0
    %139 = vmatpush1.msra.mxu0 %v136
    %140 = vmatprep.subr.mxu0 0.0
    %141 = vmatpush1.msra.mxu0 0.0
    %142 = vmatprep.subr.mxu0 0.0
    %143 = vmatpush1.msra.mxu0 0.0
    %144 = vmatprep.subr.mxu0 0.0
    %145 = vmatpush1.msra.mxu0 0.0
    %146 = vmatprep.subr.mxu0 0.0
    %147 = vmatpush1.msra.mxu0 0.0
    %148 = vmatprep.subr.mxu0 0.0
    %149 = vmatpush1.msra.mxu0 0.0
    %150 = vmatprep.subr.mxu0 0.0
    %151 = vmatpush1.msra.mxu0 0.0
    %152 = vmatprep.subr.mxu0 0.0
    %153 = vmatpush1.msra.mxu0 0.0
    %154 = vmatprep.subr.mxu0 0.0
    %155 = vmatpush1.msra.mxu0 0.0
    %156 = vmatprep.subr.mxu0 0.0
    %157 = vmatpush1.msra.mxu0 0.0
    %158 = vmatprep.subr.mxu0 0.0
    %159 = vmatpush1.msra.mxu0 0.0
    %160 = vmatprep.subr.mxu0 0.0
    %161 = vmatpush1.msra.mxu0 0.0
    %162 = vmatprep.subr.mxu0 0.0
    %163 = vmatpush1.msra.mxu0 0.0
    %164 = vmatprep.subr.mxu0 0.0
    %165 = vmatpush1.msra.mxu0 0.0
    %166 = vmatprep.subr.mxu0 0.0
    %167 = vmatpush1.msra.mxu0 0.0
    %168 = vmatprep.subr.mxu0 0.0
    %169 = vmatpush1.msra.mxu0 0.0
    %170 = vmatprep.subr.mxu0 0.0
    %171 = vmatpush1.msra.mxu0 0.0
    %172 = vmatprep.subr.mxu0 0.0
    %173 = vmatpush1.msra.mxu0 0.0
    %174 = vmatprep.subr.mxu0 0.0
    %175 = vmatpush1.msra.mxu0 0.0
    %176 = vmatprep.subr.mxu0 0.0
    %177 = vmatpush1.msra.mxu0 0.0
    %178 = vmatprep.subr.mxu0 0.0
    %179 = vmatpush1.msra.mxu0 0.0
    %180 = vmatprep.subr.mxu0 0.0
    %181 = vmatpush1.msra.mxu0 0.0
    %182 = vmatprep.subr.mxu0 0.0
    %183 = vmatpush1.msra.mxu0 0.0
    %184 = vmatprep.subr.mxu0 0.0
    %185 = vmatpush1.msra.mxu0 0.0
    %186 = vmatprep.subr.mxu0 0.0
    %187 = vmatpush1.msra.mxu0 0.0
    %188 = vmatprep.subr.mxu0 0.0
    %189 = vmatpush1.msra.mxu0 0.0
    %190 = vmatprep.subr.mxu0 0.0
    %191 = vmatpush1.msra.mxu0 0.0
    %192 = vmatprep.subr.mxu0 0.0
    %193 = vmatpush1.msra.mxu0 0.0
    %194 = vmatprep.subr.mxu0 0.0
    %195 = vmatpush1.msra.mxu0 0.0
    %196 = vmatprep.subr.mxu0 0.0
    %197 = vmatpush1.msra.mxu0 0.0
    %198 = vmatprep.subr.mxu0 0.0
    %199 = vmatpush1.msra.mxu0 0.0
    %200 = vmatprep.subr.mxu0 0.0
    %201 = vmatpush1.msra.mxu0 0.0
    %202 = vmatprep.mubr.f32.mxu0 0.0
    %203 = vmatmul.mubr.f32.gmra.mrb[0].mxu0 %v133
    %v204 = vpop.f32.mrb[0].mxu0
    %v205 = vadd.f32 %v130, %v204
    %v206 = vpop.f32.mrb[0].mxu0
    %207 = vdwg.mxu0
    %v208 = vmul.f32 %v205, %v205
    %vm209 = vcmask 261120
    %v210 = vsel %vm209, %v208, 0.0
    %211 = vadd.xlane.f32.xlu0 %v210
    %v212 = vpop.xlane.xlu0 %211
    %v213 = vmax.f32 %v212, 1e-24
    %v214 = vrsqrt.pop %v213
    %v215 = vmul.f32 %v205, %v214
    %v216 = vmul.f32 %v122, 14.285714
    %v217 = vpack.c.bf16 %v216, %v216
    %vm218 = vcmask 254976
    %219 = vst.msk [vmem:[#allocation2] sm:$0x3] %vm218, %v217
    %v220 = vpack.c.bf16 %v215, %v215
    %vm221 = vcmask 253952
    %222 = vst.msk [vmem:[#allocation4] sm:$0x1] %vm221, %v220
    %v225 = vunpack.c.l.s4 1983009808
    %v226 = vunpack.c.0.s8 %v225
    %v227 = vlaneseq
    %v228 = vshrl.u32 %v227, 7
    %v229 = vsub.s32 %v226, %v228
    %v230 = vrot.slane %v220, %v229
    %v231 = vcombine.high %v230, %v230
    %v232 = vrot.slane %v231, 7
    %vm234 = vcmask 254977
    %235 = vst.msk [vmem:[#allocation4] sm:$0x2] %vm234, %v232
    %v236 = vmul.f32 %v216, %v215
    %v237 = vsel %vm218, %v236, 0.0
    %238 = vadd.xlane.f32.xlu0 %v237
    %v239 = vpop.xlane.xlu0 %238
    %v241 = vrot.slane %v215, 2
    %v243 = vmul.f32 %v216, %v241
    %vm244 = vcmask 257026
    %v245 = vsel %vm244, %v243, 0.0
    %246 = vadd.xlane.f32.xlu0 %v245
    %v247 = vpop.xlane.xlu0 %246
    %v248 = vrot.slane %v215, 4
    %v250 = vmul.f32 %v216, %v248
    %v251 = vsel %vm218, %v250, 0.0
    %252 = vadd.xlane.f32.xlu0 %v251
    %v253 = vpop.xlane.xlu0 %252
    %v254 = vrot.slane %v215, 6
    %v256 = vmul.f32 %v216, %v254
    %v257 = vsel %vm244, %v256, 0.0
    %258 = vadd.xlane.f32.xlu0 %v257
    %v259 = vpop.xlane.xlu0 %258
    %v260 = vsel %vm218, %v243, 0.0
    %261 = vadd.xlane.f32.xlu0 %v260
    %v262 = vpop.xlane.xlu0 %261
    %v263 = vsel %vm244, %v250, 0.0
    %264 = vadd.xlane.f32.xlu0 %v263
    %v265 = vpop.xlane.xlu0 %264
    %v266 = vsel %vm218, %v256, 0.0
    %267 = vadd.xlane.f32.xlu0 %v266
    %v268 = vpop.xlane.xlu0 %267
    %v269 = vsel %vm244, %v236, 0.0
    %270 = vadd.xlane.f32.xlu0 %v269
    %v271 = vpop.xlane.xlu0 %270
    %v273 = vrot.slane %v247, 2
    %v276 = vrot.slane %v259, 2
    %v279 = vrot.slane %v265, 2
    %v282 = vrot.slane %v271, 2
    %vm284 = vcmask 7168
    %v285 = vsel %vm284, %v239, %v273
    %vm286 = vcmask 15360
    %v287 = vsel %vm286, %v285, %v253
    %vm288 = vcmask 23552
    %v289 = vsel %vm288, %v287, %v276
    %v290 = vsel %vm37, %v289, %v262
    %vm291 = vcmask 39936
    %v292 = vsel %vm291, %v290, %v279
    %vm293 = vcmask 48128
    %v294 = vsel %vm293, %v292, %v268
    %vm295 = vcmask 56320
    %v296 = vsel %vm295, %v294, %v282
    %vm297 = vcmask 58368
    %298 = vst.msk [vmem:[#allocation6] sm:$0x3] %vm297, %v296
    // Predicated region
    $region26: #{tpu_custom_call.1} parent=1 // pred_check
      _
    $region27: #{tpu_custom_call.1} parent=1 // pred_check_branch
      %300 = sbr.rel (0) target = $region29
    $region28: #{tpu_custom_call.1} parent=1 // pred_region
      %s302 = ssub.s32 32, 32
      %303 = vsyncadd [#allocation3], %s302
      %s305 = sshll.u32 [#allocation2], 4
      %s306 = int_to_ptr.vmem [resolvable:$true] %s305
      %308 = dma.vmem_to_hbm [thread:$0]  %s306, 32, %s6, [#allocation3]
    $region29: #{tpu_custom_call.1} parent=1 // pred_fallthru
      _
    // Predicated region
    $region30: #{tpu_custom_call.1} parent=1 // pred_check
      _
    $region31: #{tpu_custom_call.1} parent=1 // pred_check_branch
      %310 = sbr.rel (0) target = $region33
    $region32: #{tpu_custom_call.1} parent=1 // pred_region
      %s312 = ssub.s32 32, 32
      %313 = vsyncadd [#allocation5], %s312
      %s315 = sshll.u32 [#allocation4], 4
      %s316 = int_to_ptr.vmem [resolvable:$true] %s315
      %318 = dma.vmem_to_hbm [thread:$0]  %s316, 32, %s7, [#allocation5]
    $region33: #{tpu_custom_call.1} parent=1 // pred_fallthru
      _
    // Predicated region
    $region34: #{tpu_custom_call.1} parent=1 // pred_check
      _
    $region35: #{tpu_custom_call.1} parent=1 // pred_check_branch
      %320 = sbr.rel (0) target = $region37
    $region36: #{tpu_custom_call.1} parent=1 // pred_region
      %s322 = ssub.s32 32, 32
      %323 = vsyncadd [#allocation5], %s322
      %s325 = sshll.u32 [#allocation6], 4
      %s326 = int_to_ptr.vmem [resolvable:$true] %s325
      %328 = dma.vmem_to_hbm [thread:$0]  %s326, 32, %s8, [#allocation5]
    $region37: #{tpu_custom_call.1} parent=1 // pred_fallthru
      _
    // Predicated region
    $region38: #{tpu_custom_call.1} parent=1 // pred_check
      _
    $region39: #{tpu_custom_call.1} parent=1 // pred_check_branch
      %330 = sbr.rel (0) target = $region41
    $region40: #{tpu_custom_call.1} parent=1 // pred_region
      %331 = dma.done [#allocation3], 32
    $region41: #{tpu_custom_call.1} parent=1 // pred_fallthru
      _
    // Predicated region
    $region42: #{tpu_custom_call.1} parent=1 // pred_check
      _
    $region43: #{tpu_custom_call.1} parent=1 // pred_check_branch
      %333 = sbr.rel (0) target = $region45
    $region44: #{tpu_custom_call.1} parent=1 // pred_region
      %334 = dma.done [#allocation5], 32
    $region45: #{tpu_custom_call.1} parent=1 // pred_fallthru
      _
    // Predicated region
    $region46: #{tpu_custom_call.1} parent=1 // pred_check
      _
    $region47: #{tpu_custom_call.1} parent=1 // pred_check_branch
      %336 = sbr.rel (0) target = $region49
    $region48: #{tpu_custom_call.1} parent=1 // pred_region
      %337 = dma.done [#allocation5], 32
    $region49: #{tpu_custom_call.1} parent=1 // pred_fallthru
      _
    %338 = vsyncpa [#allocation3], 1
    %339 = vsyncpa [#allocation5], 1

</llo_original>
